<compile_context>
chip_gen: v7x
topology: tpu7x:2x2x1
jax: 0.10.0
libtpu: 0.0.40
codegen_flags: <defaults>
</compile_context>

<pallas_src>
import functools

import jax
import jax.numpy as jnp
from jax.experimental import pallas as pl
from jax.experimental.pallas import tpu as pltpu

EPSILON = 1e-07

# 2048 rows x 128 lanes = 262,144 samples per grid step.
DEFAULT_BLOCK_ROWS = 2048


def _round_up(x, m):
    return (x + m - 1) // m * m


def _fold8(x):
    """(TR, 128) -> (8, 128) partial sums using only vreg-aligned VPU adds."""
    tr = x.shape[0]
    return jnp.sum(x.reshape(tr // 8, 8, 128), axis=0)


def _soft_f1(tp, sp, cnt, eps):
    """Per-class soft F1 from tp, sum(probs) and one-hot count."""
    fp = sp - tp
    fn = cnt - tp
    precision = tp / (tp + fp + eps)
    recall = tp / (tp + fn + eps)
    f1 = 2.0 * precision * recall / (precision + recall + eps)
    return jnp.clip(f1, eps, 1.0 - eps)


def _valid_mask(step, tr, n_valid):
    """Mask for wrapper padding AND any Pallas partial final block."""
    row = jax.lax.broadcasted_iota(jnp.int32, (tr, 128), 0)
    lane = jax.lax.broadcasted_iota(jnp.int32, (tr, 128), 1)
    idx = step * (tr * 128) + row * 128 + lane
    return idx < n_valid


def _f1_loss_c2_kernel(y_pred_ref, y_true_ref, out_ref, s_ref, t_ref, k_ref,
                       *, n_valid, epsilon):
    """Specialized num_labels == 2 path (logistic instead of softmax)."""
    step = pl.program_id(0)

    @pl.when(step == 0)
    def _init():
        s_ref[...] = jnp.zeros_like(s_ref)
        t_ref[...] = jnp.zeros_like(t_ref)
        k_ref[...] = jnp.zeros_like(k_ref)

    tr = y_true_ref.shape[0]
    labels = y_true_ref[...]                              # (TR, 128) int32
    valid = _valid_mask(step, tr, n_valid)                # (TR, 128) bool

    # softmax([x0, x1])[1] == sigmoid(x1 - x0): one transcendental per sample.
    d = y_pred_ref[1].astype(jnp.float32) - y_pred_ref[0].astype(jnp.float32)
    p1 = 1.0 / (1.0 + jnp.exp(-d))                        # exact divide
    is1 = (labels == 1) & valid

    # Per-(sublane, lane) partials; single XLU reduce happens in the epilogue.
    s_ref[...] += _fold8(jnp.where(valid, p1, 0.0))       # S = sum p1
    t_ref[...] += _fold8(jnp.where(is1, p1, 0.0))         # T = sum_{y=1} p1
    k_ref[...] += _fold8(is1.astype(jnp.float32))         # K = #(y == 1)

    @pl.when(step == pl.num_programs(0) - 1)
    def _finalize():
        nf = jnp.float32(n_valid)
        s = jnp.sum(s_ref[...], keepdims=True)            # (1, 1)
        t = jnp.sum(t_ref[...], keepdims=True)
        k = jnp.sum(k_ref[...], keepdims=True)
        # Class 1 stats directly; class 0 reconstructed algebraically.
        tp1, sp1, cnt1 = t, s, k
        tp0 = (nf - k) - (s - t)                          # sum_{y=0} (1 - p1)
        sp0 = nf - s
        cnt0 = nf - k
        f1_0 = _soft_f1(tp0, sp0, cnt0, epsilon)
        f1_1 = _soft_f1(tp1, sp1, cnt1, epsilon)
        out_ref[...] = 1.0 - 0.5 * (f1_0 + f1_1)


def _f1_loss_general_kernel(y_pred_ref, y_true_ref, out_ref,
                            tp_ref, sp_ref, cnt_ref, *, n_valid, epsilon):
    """General num_labels path (stable softmax, exact divide)."""
    step = pl.program_id(0)

    @pl.when(step == 0)
    def _init():
        tp_ref[...] = jnp.zeros_like(tp_ref)
        sp_ref[...] = jnp.zeros_like(sp_ref)
        cnt_ref[...] = jnp.zeros_like(cnt_ref)

    c = y_pred_ref.shape[0]
    tr = y_true_ref.shape[0]
    labels = y_true_ref[...]                              # (TR, 128)
    valid = _valid_mask(step, tr, n_valid)

    logits = y_pred_ref[...].astype(jnp.float32)          # (C, TR, 128)
    m = jnp.max(logits, axis=0, keepdims=True)            # slab-wise VPU max
    e = jnp.exp(logits - m)
    denom = jnp.sum(e, axis=0, keepdims=True)
    probs = e / denom                                     # exact divide

    for ci in range(c):                                   # small static C loop
        onehot = (labels == ci) & valid                   # no class-dim iota
        p_c = probs[ci]
        tp_ref[ci, :, :] = tp_ref[ci, :, :] + _fold8(jnp.where(onehot, p_c, 0.0))
        sp_ref[ci, :, :] = sp_ref[ci, :, :] + _fold8(jnp.where(valid, p_c, 0.0))
        cnt_ref[ci, :, :] = cnt_ref[ci, :, :] + _fold8(onehot.astype(jnp.float32))

    @pl.when(step == pl.num_programs(0) - 1)
    def _finalize():
        def red(a):                                       # (C, 8, 128) -> (C, 1)
            return jnp.sum(jnp.sum(a, axis=2), axis=1, keepdims=True)
        tp = red(tp_ref[...])
        sp = red(sp_ref[...])
        cnt = red(cnt_ref[...])
        f1 = _soft_f1(tp, sp, cnt, epsilon)               # (C, 1)
        out_ref[...] = 1.0 - jnp.mean(f1, axis=0, keepdims=True)


def f1_loss(y_pred, y_true, num_labels=2, block_rows=DEFAULT_BLOCK_ROWS,
            epsilon=EPSILON):
    """y_pred: (N, num_labels) float, y_true: (N,) int labels. Returns scalar."""
    assert y_pred.ndim == 2
    assert y_true.ndim == 1
    assert block_rows % 8 == 0
    n, c = y_pred.shape
    assert c == num_labels

    # Dense class-major layout (C, R, 128); batch padded only up to a multiple
    # of 1024 (8 sublanes x 128 lanes).  pad + transpose + reshape fuse into a
    # single XLA copy of y_pred; produce class-major logits upstream to remove
    # even that pass.  Labels stay in their (cheap) int stream; pass int8/int16
    # labels upstream to further cut HBM bytes.
    n_pad = _round_up(n, 8 * 128)
    r = n_pad // 128

    yp = y_pred
    yt = y_true.astype(jnp.int32)
    if n_pad != n:
        yp = jnp.pad(yp, ((0, n_pad - n), (0, 0)))
        yt = jnp.pad(yt, (0, n_pad - n))                  # pad value irrelevant
    yp = yp.T.reshape(c, r, 128)                          # class-major, dense
    yt = yt.reshape(r, 128)

    tr = min(block_rows, r)                               # multiple of 8
    grid = (pl.cdiv(r, tr),)                              # ragged tail masked in-kernel

    if c == 2:
        kernel = functools.partial(_f1_loss_c2_kernel, n_valid=n, epsilon=epsilon)
        scratch = [pltpu.VMEM((8, 128), jnp.float32) for _ in range(3)]
    else:
        kernel = functools.partial(_f1_loss_general_kernel, n_valid=n,
                                   epsilon=epsilon)
        scratch = [pltpu.VMEM((c, 8, 128), jnp.float32) for _ in range(3)]

    out = pl.pallas_call(
        kernel,
        out_shape=jax.ShapeDtypeStruct((1, 1), jnp.float32),
        grid_spec=pltpu.PrefetchScalarGridSpec(
            num_scalar_prefetch=0,
            grid=grid,
            in_specs=[
                pl.BlockSpec((c, tr, 128), lambda i: (0, i, 0)),
                pl.BlockSpec((tr, 128), lambda i: (i, 0)),
            ],
            out_specs=pl.BlockSpec((1, 1), lambda i: (0, 0)),
            scratch_shapes=scratch,
        ),
        compiler_params=pltpu.CompilerParams(
            dimension_semantics=("arbitrary",),           # batch = reduction axis
        ),
    )(yp, yt)
    return out[0, 0]


def _f1_loss_ref(y_pred, y_true, num_labels=2):
    """Pure-JAX reference mirroring the PyTorch module."""
    y_true_oh = jax.nn.one_hot(y_true, num_labels, dtype=jnp.float32)
    p = jax.nn.softmax(y_pred.astype(jnp.float32), axis=1)
    tp = jnp.sum(y_true_oh * p, axis=0)
    fp = jnp.sum((1 - y_true_oh) * p, axis=0)
    fn = jnp.sum(y_true_oh * (1 - p), axis=0)
    precision = tp / (tp + fp + EPSILON)
    recall = tp / (tp + fn + EPSILON)
    f1 = 2 * (precision * recall) / (precision + recall + EPSILON)
    f1 = jnp.clip(f1, EPSILON, 1 - EPSILON)
    return 1 - jnp.mean(f1)


if __name__ == "__main__":
    key = jax.random.PRNGKey(0)
    k1, k2, k3, k4, k5, k6 = jax.random.split(key, 6)

    # Small shape consistent with the module defaults (num_labels=2).
    num_labels = 2
    batch = 8
    y_pred = jax.random.normal(k1, (batch, num_labels), dtype=jnp.float32)
    y_true = jax.random.randint(k2, (batch,), 0, num_labels, dtype=jnp.int32)
    loss = f1_loss(y_pred, y_true, num_labels=num_labels)
    jax.block_until_ready(loss)
    ref = _f1_loss_ref(y_pred, y_true, num_labels=num_labels)
    assert jnp.allclose(loss, ref, atol=1e-4, rtol=1e-4), (loss, ref)

    # Multi-step grid + in-kernel ragged-tail masking on the 2-class path.
    batch2 = 5000
    y_pred2 = jax.random.normal(k3, (batch2, num_labels), dtype=jnp.float32)
    y_true2 = jax.random.randint(k4, (batch2,), 0, num_labels, dtype=jnp.int32)
    loss2 = f1_loss(y_pred2, y_true2, num_labels=num_labels, block_rows=16)
    jax.block_until_ready(loss2)
    ref2 = _f1_loss_ref(y_pred2, y_true2, num_labels=num_labels)
    assert jnp.allclose(loss2, ref2, atol=1e-4, rtol=1e-4), (loss2, ref2)

    # General-C softmax path (num_labels != 2), multi-step grid + ragged tail.
    nl3 = 4
    batch3 = 3000
    y_pred3 = jax.random.normal(k5, (batch3, nl3), dtype=jnp.float32)
    y_true3 = jax.random.randint(k6, (batch3,), 0, nl3, dtype=jnp.int32)
    loss3 = f1_loss(y_pred3, y_true3, num_labels=nl3, block_rows=8)
    jax.block_until_ready(loss3)
    ref3 = _f1_loss_ref(y_pred3, y_true3, num_labels=nl3)
    assert jnp.allclose(loss3, ref3, atol=1e-4, rtol=1e-4), (loss3, ref3)

    print("KERNEL_OK")
</pallas_src>

<mosaic_0001>
module attributes {stable_mosaic.version = 11 : i64} {
  func.func @_f1_loss_c2_kernel(%arg0: i32, %arg1: memref<2x8x128xf32, #tpu.memory_space<vmem>>, %arg2: memref<8x128xi32, #tpu.memory_space<vmem>>, %arg3: memref<1x1xf32, #tpu.memory_space<vmem>>, %arg4: memref<8x128xf32, #tpu.memory_space<vmem>>, %arg5: memref<8x128xf32, #tpu.memory_space<vmem>>, %arg6: memref<8x128xf32, #tpu.memory_space<vmem>>) attributes {dimension_semantics = [#tpu.dimension_semantics<arbitrary>], iteration_bounds = array<i64: 1>, scalar_prefetch = 0 : i64, scratch_operands = 3 : i64, tpu.core_type = #tpu.core_type<tc>, window_params = [{transform_indices = @transform_0, window_bounds = array<i64: 2, 8, 128>}, {transform_indices = @transform_1, window_bounds = array<i64: 8, 128>}, {pipeline_mode = #tpu.pipeline_mode<synchronous>, transform_indices = @transform_2, window_bounds = array<i64: 1, 1>}]} {
    %c0_i32 = arith.constant 0 : i32
    %0 = arith.cmpi eq, %arg0, %c0_i32 : i32
    %1 = arith.extui %0 : i1 to i32
    %c0_i32_0 = arith.constant 0 : i32
    %2 = arith.cmpi ne, %1, %c0_i32_0 : i32
    scf.if %2 {
      %cst_28 = arith.constant 0.000000e+00 : f32
      %53 = vector.broadcast %cst_28 : f32 to vector<8x128xf32>
      %c0_29 = arith.constant 0 : index
      %c0_30 = arith.constant 0 : index
      %54 = vector.load %arg4[%c0_29, %c0_30] : memref<8x128xf32, #tpu.memory_space<vmem>>, vector<8x128xf32>
      tpu.vector_store %arg4[%c0_29, %c0_30], %53 {strides = array<i32>} : memref<8x128xf32, #tpu.memory_space<vmem>>, vector<8x128xf32>,
      %cst_31 = arith.constant 0.000000e+00 : f32
      %55 = vector.broadcast %cst_31 : f32 to vector<8x128xf32>
      %c0_32 = arith.constant 0 : index
      %c0_33 = arith.constant 0 : index
      %56 = vector.load %arg5[%c0_32, %c0_33] : memref<8x128xf32, #tpu.memory_space<vmem>>, vector<8x128xf32>
      tpu.vector_store %arg5[%c0_32, %c0_33], %55 {strides = array<i32>} : memref<8x128xf32, #tpu.memory_space<vmem>>, vector<8x128xf32>,
      %cst_34 = arith.constant 0.000000e+00 : f32
      %57 = vector.broadcast %cst_34 : f32 to vector<8x128xf32>
      %c0_35 = arith.constant 0 : index
      %c0_36 = arith.constant 0 : index
      %58 = vector.load %arg6[%c0_35, %c0_36] : memref<8x128xf32, #tpu.memory_space<vmem>>, vector<8x128xf32>
      tpu.vector_store %arg6[%c0_35, %c0_36], %57 {strides = array<i32>} : memref<8x128xf32, #tpu.memory_space<vmem>>, vector<8x128xf32>,
    } else {
    }
    %c0 = arith.constant 0 : index
    %c0_1 = arith.constant 0 : index
    %3 = vector.load %arg2[%c0, %c0_1] : memref<8x128xi32, #tpu.memory_space<vmem>>, vector<8x128xi32>
    %4 = tpu.iota {dimensions = array<i32: 0>} : vector<8x128xi32>
    %5 = tpu.iota {dimensions = array<i32: 1>} : vector<8x128xi32>
    %c1024_i32 = arith.constant 1024 : i32
    %6 = arith.muli %arg0, %c1024_i32 : i32
    %c128_i32 = arith.constant 128 : i32
    %7 = vector.broadcast %c128_i32 : i32 to vector<8x128xi32>
    %8 = arith.muli %4, %7 : vector<8x128xi32>
    %9 = vector.broadcast %6 : i32 to vector<8x128xi32>
    %10 = arith.addi %9, %8 : vector<8x128xi32>
    %11 = arith.addi %10, %5 : vector<8x128xi32>
    %c8_i32 = arith.constant 8 : i32
    %12 = vector.broadcast %c8_i32 : i32 to vector<8x128xi32>
    %13 = arith.cmpi slt, %11, %12 : vector<8x128xi32>
    %c1 = arith.constant 1 : index
    %c0_2 = arith.constant 0 : index
    %c0_3 = arith.constant 0 : index
    %14 = vector.load %arg1[%c1, %c0_2, %c0_3] : memref<2x8x128xf32, #tpu.memory_space<vmem>>, vector<1x8x128xf32>
    %15 = vector.shape_cast %14 : vector<1x8x128xf32> to vector<8x128xf32>
    %c0_4 = arith.constant 0 : index
    %c0_5 = arith.constant 0 : index
    %c0_6 = arith.constant 0 : index
    %16 = vector.load %arg1[%c0_4, %c0_5, %c0_6] : memref<2x8x128xf32, #tpu.memory_space<vmem>>, vector<1x8x128xf32>
    %17 = vector.shape_cast %16 : vector<1x8x128xf32> to vector<8x128xf32>
    %18 = arith.subf %15, %17 : vector<8x128xf32>
    %cst = arith.constant 0.000000e+00 : f32
    %19 = vector.broadcast %cst : f32 to vector<8x128xf32>
    %20 = arith.subf %19, %18 : vector<8x128xf32>
    %21 = math.exp %20 : vector<8x128xf32>
    %cst_7 = arith.constant 1.000000e+00 : f32
    %22 = vector.broadcast %cst_7 : f32 to vector<8x128xf32>
    %23 = arith.addf %22, %21 : vector<8x128xf32>
    %cst_8 = arith.constant 1.000000e+00 : f32
    %24 = vector.broadcast %cst_8 : f32 to vector<8x128xf32>
    %25 = arith.divf %24, %23 : vector<8x128xf32>
    %c1_i32 = arith.constant 1 : i32
    %26 = vector.broadcast %c1_i32 : i32 to vector<8x128xi32>
    %27 = arith.cmpi eq, %3, %26 : vector<8x128xi32>
    %28 = arith.andi %27, %13 : vector<8x128xi1>
    %c0_9 = arith.constant 0 : index
    %c0_10 = arith.constant 0 : index
    %29 = vector.load %arg4[%c0_9, %c0_10] : memref<8x128xf32, #tpu.memory_space<vmem>>, vector<8x128xf32>
    %cst_11 = arith.constant 0.000000e+00 : f32
    %30 = vector.broadcast %cst_11 : f32 to vector<8x128xf32>
    %31 = arith.select %13, %25, %30 : vector<8x128xi1>, vector<8x128xf32>
    %32 = vector.shape_cast %31 : vector<8x128xf32> to vector<1x8x128xf32>
    %cst_12 = arith.constant dense<0.000000e+00> : vector<8x128xf32>
    %33 = vector.multi_reduction <add>, %32, %cst_12 [0] : vector<1x8x128xf32> to vector<8x128xf32>
    %34 = arith.addf %29, %33 : vector<8x128xf32>
    %c0_13 = arith.constant 0 : index
    %c0_14 = arith.constant 0 : index
    %35 = vector.load %arg4[%c0_13, %c0_14] : memref<8x128xf32, #tpu.memory_space<vmem>>, vector<8x128xf32>
    tpu.vector_store %arg4[%c0_13, %c0_14], %34 {strides = array<i32>} : memref<8x128xf32, #tpu.memory_space<vmem>>, vector<8x128xf32>,
    %c0_15 = arith.constant 0 : index
    %c0_16 = arith.constant 0 : index
    %36 = vector.load %arg5[%c0_15, %c0_16] : memref<8x128xf32, #tpu.memory_space<vmem>>, vector<8x128xf32>
    %cst_17 = arith.constant 0.000000e+00 : f32
    %37 = vector.broadcast %cst_17 : f32 to vector<8x128xf32>
    %38 = arith.select %28, %25, %37 : vector<8x128xi1>, vector<8x128xf32>
    %39 = vector.shape_cast %38 : vector<8x128xf32> to vector<1x8x128xf32>
    %cst_18 = arith.constant dense<0.000000e+00> : vector<8x128xf32>
    %40 = vector.multi_reduction <add>, %39, %cst_18 [0] : vector<1x8x128xf32> to vector<8x128xf32>
    %41 = arith.addf %36, %40 : vector<8x128xf32>
    %c0_19 = arith.constant 0 : index
    %c0_20 = arith.constant 0 : index
    %42 = vector.load %arg5[%c0_19, %c0_20] : memref<8x128xf32, #tpu.memory_space<vmem>>, vector<8x128xf32>
    tpu.vector_store %arg5[%c0_19, %c0_20], %41 {strides = array<i32>} : memref<8x128xf32, #tpu.memory_space<vmem>>, vector<8x128xf32>,
    %c0_21 = arith.constant 0 : index
    %c0_22 = arith.constant 0 : index
    %43 = vector.load %arg6[%c0_21, %c0_22] : memref<8x128xf32, #tpu.memory_space<vmem>>, vector<8x128xf32>
    %44 = arith.extui %28 : vector<8x128xi1> to vector<8x128xi32>
    %45 = arith.sitofp %44 : vector<8x128xi32> to vector<8x128xf32>
    %46 = vector.shape_cast %45 : vector<8x128xf32> to vector<1x8x128xf32>
    %cst_23 = arith.constant dense<0.000000e+00> : vector<8x128xf32>
    %47 = vector.multi_reduction <add>, %46, %cst_23 [0] : vector<1x8x128xf32> to vector<8x128xf32>
    %48 = arith.addf %43, %47 : vector<8x128xf32>
    %c0_24 = arith.constant 0 : index
    %c0_25 = arith.constant 0 : index
    %49 = vector.load %arg6[%c0_24, %c0_25] : memref<8x128xf32, #tpu.memory_space<vmem>>, vector<8x128xf32>
    tpu.vector_store %arg6[%c0_24, %c0_25], %48 {strides = array<i32>} : memref<8x128xf32, #tpu.memory_space<vmem>>, vector<8x128xf32>,
    %c0_i32_26 = arith.constant 0 : i32
    %50 = arith.cmpi eq, %arg0, %c0_i32_26 : i32
    %51 = arith.extui %50 : i1 to i32
    %c0_i32_27 = arith.constant 0 : i32
    %52 = arith.cmpi ne, %51, %c0_i32_27 : i32
    scf.if %52 {
      %c0_28 = arith.constant 0 : index
      %c0_29 = arith.constant 0 : index
      %53 = vector.load %arg4[%c0_28, %c0_29] : memref<8x128xf32, #tpu.memory_space<vmem>>, vector<8x128xf32>
      %54 = vector.shape_cast %53 : vector<8x128xf32> to vector<1x8x128xf32>
      %cst_30 = arith.constant dense<0.000000e+00> : vector<1xf32>
      %55 = vector.multi_reduction <add>, %54, %cst_30 [1, 2] : vector<1x8x128xf32> to vector<1xf32>
      %56 = vector.shape_cast %55 : vector<1xf32> to vector<1x1x1xf32>
      %57 = vector.extract %56[0, 0, 0] : f32 from vector<1x1x1xf32>
      %58 = vector.broadcast %57 : f32 to vector<1x1xf32>
      %c0_31 = arith.constant 0 : index
      %c0_32 = arith.constant 0 : index
      %59 = vector.load %arg5[%c0_31, %c0_32] : memref<8x128xf32, #tpu.memory_space<vmem>>, vector<8x128xf32>
      %60 = vector.shape_cast %59 : vector<8x128xf32> to vector<1x8x128xf32>
      %cst_33 = arith.constant dense<0.000000e+00> : vector<1xf32>
      %61 = vector.multi_reduction <add>, %60, %cst_33 [1, 2] : vector<1x8x128xf32> to vector<1xf32>
      %62 = vector.shape_cast %61 : vector<1xf32> to vector<1x1x1xf32>
      %63 = vector.extract %62[0, 0, 0] : f32 from vector<1x1x1xf32>
      %64 = vector.broadcast %63 : f32 to vector<1x1xf32>
      %c0_34 = arith.constant 0 : index
      %c0_35 = arith.constant 0 : index
      %65 = vector.load %arg6[%c0_34, %c0_35] : memref<8x128xf32, #tpu.memory_space<vmem>>, vector<8x128xf32>
      %66 = vector.shape_cast %65 : vector<8x128xf32> to vector<1x8x128xf32>
      %cst_36 = arith.constant dense<0.000000e+00> : vector<1xf32>
      %67 = vector.multi_reduction <add>, %66, %cst_36 [1, 2] : vector<1x8x128xf32> to vector<1xf32>
      %68 = vector.shape_cast %67 : vector<1xf32> to vector<1x1x1xf32>
      %69 = vector.extract %68[0, 0, 0] : f32 from vector<1x1x1xf32>
      %70 = vector.broadcast %69 : f32 to vector<1x1xf32>
      %cst_37 = arith.constant 8.000000e+00 : f32
      %71 = vector.broadcast %cst_37 : f32 to vector<1x1xf32>
      %72 = arith.subf %71, %70 : vector<1x1xf32>
      %73 = arith.subf %58, %64 : vector<1x1xf32>
      %74 = arith.subf %72, %73 : vector<1x1xf32>
      %cst_38 = arith.constant 8.000000e+00 : f32
      %75 = vector.broadcast %cst_38 : f32 to vector<1x1xf32>
      %76 = arith.subf %75, %58 : vector<1x1xf32>
      %cst_39 = arith.constant 8.000000e+00 : f32
      %77 = vector.broadcast %cst_39 : f32 to vector<1x1xf32>
      %78 = arith.subf %77, %70 : vector<1x1xf32>
      %79 = arith.subf %76, %74 : vector<1x1xf32>
      %80 = arith.subf %78, %74 : vector<1x1xf32>
      %81 = arith.addf %74, %79 : vector<1x1xf32>
      %cst_40 = arith.constant 1.000000e-07 : f32
      %82 = vector.broadcast %cst_40 : f32 to vector<1x1xf32>
      %83 = arith.addf %81, %82 : vector<1x1xf32>
      %84 = arith.divf %74, %83 : vector<1x1xf32>
      %85 = arith.addf %74, %80 : vector<1x1xf32>
      %cst_41 = arith.constant 1.000000e-07 : f32
      %86 = vector.broadcast %cst_41 : f32 to vector<1x1xf32>
      %87 = arith.addf %85, %86 : vector<1x1xf32>
      %88 = arith.divf %74, %87 : vector<1x1xf32>
      %cst_42 = arith.constant 2.000000e+00 : f32
      %89 = vector.broadcast %cst_42 : f32 to vector<1x1xf32>
      %90 = arith.mulf %89, %84 : vector<1x1xf32>
      %91 = arith.mulf %90, %88 : vector<1x1xf32>
      %92 = arith.addf %84, %88 : vector<1x1xf32>
      %cst_43 = arith.constant 1.000000e-07 : f32
      %93 = vector.broadcast %cst_43 : f32 to vector<1x1xf32>
      %94 = arith.addf %92, %93 : vector<1x1xf32>
      %95 = arith.divf %91, %94 : vector<1x1xf32>
      %cst_44 = arith.constant 1.000000e-07 : f32
      %cst_45 = arith.constant 0.99999988 : f32
      %96 = vector.broadcast %cst_44 : f32 to vector<1x1xf32>
      %97 = arith.maximumf %96, %95 : vector<1x1xf32>
      %98 = vector.broadcast %cst_45 : f32 to vector<1x1xf32>
      %99 = arith.minimumf %98, %97 : vector<1x1xf32>
      %100 = arith.subf %58, %64 : vector<1x1xf32>
      %101 = arith.subf %70, %64 : vector<1x1xf32>
      %102 = arith.addf %64, %100 : vector<1x1xf32>
      %cst_46 = arith.constant 1.000000e-07 : f32
      %103 = vector.broadcast %cst_46 : f32 to vector<1x1xf32>
      %104 = arith.addf %102, %103 : vector<1x1xf32>
      %105 = arith.divf %64, %104 : vector<1x1xf32>
      %106 = arith.addf %64, %101 : vector<1x1xf32>
      %cst_47 = arith.constant 1.000000e-07 : f32
      %107 = vector.broadcast %cst_47 : f32 to vector<1x1xf32>
      %108 = arith.addf %106, %107 : vector<1x1xf32>
      %109 = arith.divf %64, %108 : vector<1x1xf32>
      %cst_48 = arith.constant 2.000000e+00 : f32
      %110 = vector.broadcast %cst_48 : f32 to vector<1x1xf32>
      %111 = arith.mulf %110, %105 : vector<1x1xf32>
      %112 = arith.mulf %111, %109 : vector<1x1xf32>
      %113 = arith.addf %105, %109 : vector<1x1xf32>
      %cst_49 = arith.constant 1.000000e-07 : f32
      %114 = vector.broadcast %cst_49 : f32 to vector<1x1xf32>
      %115 = arith.addf %113, %114 : vector<1x1xf32>
      %116 = arith.divf %112, %115 : vector<1x1xf32>
      %cst_50 = arith.constant 1.000000e-07 : f32
      %cst_51 = arith.constant 0.99999988 : f32
      %117 = vector.broadcast %cst_50 : f32 to vector<1x1xf32>
      %118 = arith.maximumf %117, %116 : vector<1x1xf32>
      %119 = vector.broadcast %cst_51 : f32 to vector<1x1xf32>
      %120 = arith.minimumf %119, %118 : vector<1x1xf32>
      %121 = arith.addf %99, %120 : vector<1x1xf32>
      %cst_52 = arith.constant 5.000000e-01 : f32
      %122 = vector.broadcast %cst_52 : f32 to vector<1x1xf32>
      %123 = arith.mulf %122, %121 : vector<1x1xf32>
      %cst_53 = arith.constant 1.000000e+00 : f32
      %124 = vector.broadcast %cst_53 : f32 to vector<1x1xf32>
      %125 = arith.subf %124, %123 : vector<1x1xf32>
      %c0_54 = arith.constant 0 : index
      %c0_55 = arith.constant 0 : index
      %126 = vector.load %arg3[%c0_54, %c0_55] : memref<1x1xf32, #tpu.memory_space<vmem>>, vector<1x1xf32>
      tpu.vector_store %arg3[%c0_54, %c0_55], %125 {strides = array<i32>} : memref<1x1xf32, #tpu.memory_space<vmem>>, vector<1x1xf32>,
    } else {
    }
    return
  }
  func.func @transform_0(%arg0: i32) -> (i32, i32, i32) {
    %c0_i32 = arith.constant 0 : i32
    %c0_i32_0 = arith.constant 0 : i32
    %c0_i32_1 = arith.constant 0 : i32
    return %c0_i32, %arg0, %c0_i32_0 : i32, i32, i32
  }
  func.func @transform_1(%arg0: i32) -> (i32, i32) {
    %c0_i32 = arith.constant 0 : i32
    %c0_i32_0 = arith.constant 0 : i32
    return %arg0, %c0_i32 : i32, i32
  }
  func.func @transform_2(%arg0: i32) -> (i32, i32) {
    %c0_i32 = arith.constant 0 : i32
    %c0_i32_0 = arith.constant 0 : i32
    %c0_i32_1 = arith.constant 0 : i32
    return %c0_i32, %c0_i32_0 : i32, i32
  }
}

</mosaic_0001>

<llo_original>
// kernel: tpu_custom_call.1
$region0: #{tpu_custom_call.1}
  #allocation0 [shape = 'u32[]', space=smem, size = 0x4, offset = 0x4, fixed_abs, tag = 'smem constant byte address 0x4 - core index']
  #allocation1 [shape = 'u32[144,128]{1,0:T(1,128)}', space=vmem, size = 0x12000, scoped, tag = 'internal scratch']
  #allocation2 [shape = 'f32[8,128]{1,0:T(8,128)}', space=vmem, size = 0x1000, scoped, tag = 'scratch operand']
  #allocation3 [shape = 'f32[8,128]{1,0:T(8,128)}', space=vmem, size = 0x1000, scoped, tag = 'scratch operand']
  #allocation4 [shape = 'f32[8,128]{1,0:T(8,128)}', space=vmem, size = 0x1000, scoped, tag = 'scratch operand']
  %s0 = inlined_call_operand.hbm [shape: f32[2,8,128], index: 0, kind: input, shape index: {}]
  %s1 = inlined_call_operand.hbm [shape: s32[8,128], index: 1, kind: input, shape index: {}]
  %s2 = inlined_call_operand.hbm [shape: f32[1,1], index: 2, kind: output, shape index: {}]
  %s3 = sld [smem:[#allocation0]]
  $region34: #{tpu_custom_call.1} parent=0
    _
  %s5 = ssub.s32 1, %s3
  %s6 = scalar_select 0, %s5, %s3
  $region1: #{tpu_custom_call.1} parent=0
    #allocation5 [shape = 'u8[8192]{0}', space=vmem, size = 0x2000, scoped, tag = 'input window, operand 0, single buffered']
    #allocation6 [shape = 's32[1]{0}', space=sflag, size = 0x4, scoped, tag = 'scoped memory for tpu_custom_call.1']
    #allocation7 [shape = 's32[1]{0}', space=sflag, size = 0x4, scoped, tag = 'scoped memory for tpu_custom_call.1']
    #allocation8 [shape = 'u8[4096]{0}', space=vmem, size = 0x1000, scoped, tag = 'input window, operand 1, single buffered']
    #allocation9 [shape = 's32[1]{0}', space=sflag, size = 0x4, scoped, tag = 'scoped memory for tpu_custom_call.1']
    #allocation10 [shape = 'u8[512]{0}', space=vmem, size = 0x400, scoped, tag = 'output window, operand 0, single buffered']
    %7 = vsyncpa [#allocation6], 0
    %8 = vsyncpa [#allocation9], 0
    %9 = vsyncpa [#allocation7], 0
    // Predicated region
    $region2: #{tpu_custom_call.1} parent=1 // pred_check
      _
    $region3: #{tpu_custom_call.1} parent=1 // pred_check_branch
      %11 = sbr.rel (0) target = $region5
    $region4: #{tpu_custom_call.1} parent=1 // pred_region
      %s13 = ssub.s32 256, 256
      %14 = vsyncadd [#allocation6], %s13
      %s15 = sshll.u32 [#allocation5], 4
      %s16 = int_to_ptr.vmem [resolvable:$true] %s15
      %21 = dma.hbm_to_vmem [thread:$0]  %s0, 256, %s16, [#allocation6], 128, 128, 8
    $region5: #{tpu_custom_call.1} parent=1 // pred_fallthru
      _
    // Predicated region
    $region6: #{tpu_custom_call.1} parent=1 // pred_check
      _
    $region7: #{tpu_custom_call.1} parent=1 // pred_check_branch
      %23 = sbr.rel (0) target = $region9
    $region8: #{tpu_custom_call.1} parent=1 // pred_region
      %s25 = ssub.s32 128, 128
      %26 = vsyncadd [#allocation9], %s25
      %s28 = sshll.u32 [#allocation8], 4
      %s29 = int_to_ptr.vmem [resolvable:$true] %s28
      %31 = dma.hbm_to_vmem [thread:$0]  %s1, 128, %s29, [#allocation9]
    $region9: #{tpu_custom_call.1} parent=1 // pred_fallthru
      _
    // Predicated region
    $region10: #{tpu_custom_call.1} parent=1 // pred_check
      _
    $region11: #{tpu_custom_call.1} parent=1 // pred_check_branch
      %33 = sbr.rel (0) target = $region13
    $region12: #{tpu_custom_call.1} parent=1 // pred_region
      %34 = dma.done [#allocation6], 256
    $region13: #{tpu_custom_call.1} parent=1 // pred_fallthru
      _
    // Predicated region
    $region14: #{tpu_custom_call.1} parent=1 // pred_check
      _
    $region15: #{tpu_custom_call.1} parent=1 // pred_check_branch
      %36 = sbr.rel (0) target = $region17
    $region16: #{tpu_custom_call.1} parent=1 // pred_region
      %37 = dma.done [#allocation9], 128
    $region17: #{tpu_custom_call.1} parent=1 // pred_fallthru
      _
    %p38 = scmp.eq.s32.totalorder 0, 0
    // Predicated region
    $region18: #{tpu_custom_call.1} parent=1 // pred_check
      %p39 = pneg %p38
    $region19: #{tpu_custom_call.1} parent=1 // pred_check_branch
      %41 = sbr.rel (%p39) target = $region21
    $region20: #{tpu_custom_call.1} parent=1 // pred_region
      %42 = vst [vmem:[#allocation2] sm:$0xff] 0.0
      %43 = vst [vmem:[#allocation3] sm:$0xff] 0.0
      %44 = vst [vmem:[#allocation4] sm:$0xff] 0.0
    $region21: #{tpu_custom_call.1} parent=1 // pred_fallthru
      _
    %v45 = vld [vmem:[#allocation8] sm:$0xff]
    %v46 = vlaneseq
    %v47 = vshrl.u32 %v46, 7
    %v48 = vlaneseq
    %v49 = vand.u32 %v48, 127
    %s50 = smul.u32 0, 1024
    %v51 = vmul.u32 %v47, 128
    %v52 = vstv %s50
    %v53 = vadd.s32 %v52, %v51
    %v54 = vadd.s32 %v53, %v49
    %vm55 = vcmp.lt.s32.totalorder %v54, 8
    %s56 = scalar_lea.vmem [#allocation5], 8
    %v57 = vld [vmem:[%s56] sm:$0xff]
    %v58 = vld [vmem:[#allocation5] sm:$0xff]
    %v59 = vsub.f32 %v57, %v58
    %v60 = vsub.f32 0.0, %v59
    %v61 = vmul.f32 %v60, 1.442695
    %v62 = vpow.pop %v61
    %v63 = vadd.f32 %v62, 1.0
    %v64 = vrcp.pop %v63
    %v65 = vmul.f32 1.0, %v64
    %vm66 = vcmp.eq.s32.totalorder %v45, 1
    %vm67 = vmand %vm66, %vm55
    %v68 = vld [vmem:[#allocation2] sm:$0xff]
    %v69 = vsel %vm55, %v65, 0.0
    %v70 = vadd.f32 %v69, 0.0
    %v71 = vadd.f32 %v68, %v70
    %72 = vst [vmem:[#allocation2] sm:$0xff] %v71
    %v73 = vld [vmem:[#allocation3] sm:$0xff]
    %v74 = vsel %vm67, %v65, 0.0
    %v75 = vadd.f32 %v74, 0.0
    %v76 = vadd.f32 %v73, %v75
    %77 = vst [vmem:[#allocation3] sm:$0xff] %v76
    %v78 = vld [vmem:[#allocation4] sm:$0xff]
    %v79 = vsel %vm67, 1, 0
    %v80 = vcvt.s32.f32 %v79
    %v81 = vadd.f32 %v80, 0.0
    %v82 = vadd.f32 %v78, %v81
    %83 = vst [vmem:[#allocation4] sm:$0xff] %v82
    // Predicated region
    $region22: #{tpu_custom_call.1} parent=1 // pred_check
      %p84 = pneg %p38
    $region23: #{tpu_custom_call.1} parent=1 // pred_check_branch
      %86 = sbr.rel (%p84) target = $region25
    $region24: #{tpu_custom_call.1} parent=1 // pred_region
      %v87 = vld [vmem:[#allocation2] sm:$0xff]
      %88 = vadd.xlane.f32.xlu0 %v87
      %v89 = vpop.xlane.xlu0 %88
      %v90 = vrot.slane %v89, 4
      %v91 = vadd.f32 %v89, %v90
      %v92 = vrot.slane %v91, 2
      %v93 = vadd.f32 %v91, %v92
      %v94 = vrot.slane %v93, 1
      %v95 = vadd.f32 %v93, %v94
      %s96 = vtos %v95
      %v97 = vstv %s96
      %v98 = vld [vmem:[#allocation3] sm:$0xff]
      %99 = vadd.xlane.f32.xlu0 %v98
      %v100 = vpop.xlane.xlu0 %99
      %v101 = vrot.slane %v100, 4
      %v102 = vadd.f32 %v100, %v101
      %v103 = vrot.slane %v102, 2
      %v104 = vadd.f32 %v102, %v103
      %v105 = vrot.slane %v104, 1
      %v106 = vadd.f32 %v104, %v105
      %s107 = vtos %v106
      %v108 = vstv %s107
      %v109 = vld [vmem:[#allocation4] sm:$0xff]
      %110 = vadd.xlane.f32.xlu0 %v109
      %v111 = vpop.xlane.xlu0 %110
      %v112 = vrot.slane %v111, 4
      %v113 = vadd.f32 %v111, %v112
      %v114 = vrot.slane %v113, 2
      %v115 = vadd.f32 %v113, %v114
      %v116 = vrot.slane %v115, 1
      %v117 = vadd.f32 %v115, %v116
      %s118 = vtos %v117
      %v119 = vstv %s118
      %v120 = vsub.f32 8.0, %v119
      %v121 = vsub.f32 %v97, %v108
      %v122 = vsub.f32 %v120, %v121
      %v123 = vsub.f32 8.0, %v97
      %v124 = vsub.f32 %v123, %v122
      %v125 = vsub.f32 %v120, %v122
      %v126 = vadd.f32 %v122, %v124
      %v127 = vadd.f32 %v126, 1e-07
      %v128 = vrcp.pop %v127
      %v129 = vmul.f32 %v122, %v128
      %v130 = vadd.f32 %v122, %v125
      %v131 = vadd.f32 %v130, 1e-07
      %v132 = vrcp.pop %v131
      %v133 = vmul.f32 %v122, %v132
      %v134 = vmul.f32 %v129, 2.0
      %v135 = vmul.f32 %v134, %v133
      %v136 = vadd.f32 %v129, %v133
      %v137 = vadd.f32 %v136, 1e-07
      %v138 = vrcp.pop %v137
      %v139 = vmul.f32 %v135, %v138
      %v140 = vmax.f32 %v139, 1e-07
      %v141 = vmin.f32 %v140, 0.9999999
      %v142 = vsub.f32 %v119, %v108
      %v143 = vadd.f32 %v108, %v121
      %v144 = vadd.f32 %v143, 1e-07
      %v145 = vrcp.pop %v144
      %v146 = vmul.f32 %v108, %v145
      %v147 = vadd.f32 %v108, %v142
      %v148 = vadd.f32 %v147, 1e-07
      %v149 = vrcp.pop %v148
      %v150 = vmul.f32 %v108, %v149
      %v151 = vmul.f32 %v146, 2.0
      %v152 = vmul.f32 %v151, %v150
      %v153 = vadd.f32 %v146, %v150
      %v154 = vadd.f32 %v153, 1e-07
      %v155 = vrcp.pop %v154
      %v156 = vmul.f32 %v152, %v155
      %v157 = vmax.f32 %v156, 1e-07
      %v158 = vmin.f32 %v157, 0.9999999
      %v159 = vadd.f32 %v141, %v158
      %v160 = vmul.f32 %v159, 0.5
      %v161 = vsub.f32 1.0, %v160
      %vm162 = vcmask 0
      %163 = vst.msk [vmem:[#allocation10] sm:$0x1] %vm162, %v161
    $region25: #{tpu_custom_call.1} parent=1 // pred_fallthru
      _
    // Predicated region
    $region26: #{tpu_custom_call.1} parent=1 // pred_check
      _
    $region27: #{tpu_custom_call.1} parent=1 // pred_check_branch
      %165 = sbr.rel (0) target = $region29
    $region28: #{tpu_custom_call.1} parent=1 // pred_region
      %s167 = ssub.s32 16, 16
      %168 = vsyncadd [#allocation7], %s167
      %s170 = sshll.u32 [#allocation10], 4
      %s171 = int_to_ptr.vmem [resolvable:$true] %s170
      %173 = dma.vmem_to_hbm [thread:$0]  %s171, 16, %s2, [#allocation7]
    $region29: #{tpu_custom_call.1} parent=1 // pred_fallthru
      _
    // Predicated region
    $region30: #{tpu_custom_call.1} parent=1 // pred_check
      _
    $region31: #{tpu_custom_call.1} parent=1 // pred_check_branch
      %175 = sbr.rel (0) target = $region33
    $region32: #{tpu_custom_call.1} parent=1 // pred_region
      %176 = dma.done [#allocation7], 16
    $region33: #{tpu_custom_call.1} parent=1 // pred_fallthru
      _
    %177 = vsyncpa [#allocation6], 1
    %178 = vsyncpa [#allocation9], 1
    %179 = vsyncpa [#allocation7], 1

</llo_original>
